<compile_context>
chip_gen: v7x
topology: tpu7x:2x2x1
jax: 0.10.0
libtpu: 0.0.40
codegen_flags: <defaults>
</compile_context>

<pallas_src>
import functools

import jax
import jax.numpy as jnp
from jax.experimental import pallas as pl
from jax.experimental.pallas import tpu as pltpu


def _sigmoid(x):
    # sigmoid(x) == 0.5 * tanh(0.5 * x) + 0.5 : tanh runs on the EUP slot and
    # avoids a VALU divide on the critical path.
    return 0.5 * jnp.tanh(0.5 * x) + 0.5


def _lstm_kernel(x_ref, we_ref, be_ref, wih_ref, b_ref, wo_ref, bo_ref,
                 out_ref, h_ref, *, hidden_size):
    H = hidden_size
    layer = pl.program_id(1)

    # ---- layer 0 only: embed = Linear(input_size -> hidden) ----
    @pl.when(layer == 0)
    def _():
        x = x_ref[...].astype(we_ref.dtype)
        h_ref[...] = (jnp.dot(x, we_ref[...],
                              preferred_element_type=jnp.float32)
                      + be_ref[...])

    # ---- one LSTMCell step with zero (h, c): only i, o, g gates survive ----
    h = h_ref[...].astype(wih_ref.dtype)
    gates = (jnp.dot(h, wih_ref[0], preferred_element_type=jnp.float32)
             + b_ref[0])                                    # (bm, 3H): [i, o | g]
    sig = _sigmoid(gates[:, :2 * H])                        # one sigmoid, 2H lanes
    g_g = jnp.tanh(gates[:, 2 * H:])                        # one tanh,   H lanes
    i_g = sig[:, :H]
    o_g = sig[:, H:]
    c_new = i_g * g_g                                       # f * c_prev == 0
    h_ref[...] = o_g * jnp.tanh(c_new)

    # ---- last layer only: output head Linear(hidden -> out) + Tanh ----
    @pl.when(layer == pl.num_programs(1) - 1)
    def _():
        h_out = h_ref[...].astype(wo_ref.dtype)
        y = jnp.tanh(jnp.dot(h_out, wo_ref[...],
                             preferred_element_type=jnp.float32)
                     + bo_ref[...])
        out_ref[...] = y.astype(out_ref.dtype)


def lstm_forward(x, packed_params, *, hidden_size, n_layers, block_b=256):
    """x: (batch, input_size) f32 -> (batch, output_size) f32."""
    we, be, wih, b3, wo, bo = packed_params
    batch, input_size = x.shape
    H = hidden_size
    output_size = wo.shape[1]

    bm = min(batch, block_b)
    grid = (pl.cdiv(batch, bm), n_layers)

    kernel = functools.partial(_lstm_kernel, hidden_size=H)

    return pl.pallas_call(
        kernel,
        out_shape=jax.ShapeDtypeStruct((batch, output_size), jnp.float32),
        grid_spec=pltpu.PrefetchScalarGridSpec(
            num_scalar_prefetch=0,
            grid=grid,
            in_specs=[
                # activations: one batch tile, same block for every layer step
                pl.BlockSpec((bm, input_size), lambda b, l: (b, 0)),
                # embed weight/bias: constant block index -> DMA'd once, resident
                pl.BlockSpec(we.shape, lambda b, l: (0, 0)),
                pl.BlockSpec(be.shape, lambda b, l: (0, 0)),
                # per-layer LSTM weight/bias: streamed along the layer axis,
                # double-buffered by the pipeline (next layer prefetched while
                # the current layer computes)
                pl.BlockSpec((1, H, 3 * H), lambda b, l: (l, 0, 0)),
                pl.BlockSpec((1, 1, 3 * H), lambda b, l: (l, 0, 0)),
                # output head: resident
                pl.BlockSpec(wo.shape, lambda b, l: (0, 0)),
                pl.BlockSpec(bo.shape, lambda b, l: (0, 0)),
            ],
            out_specs=pl.BlockSpec((bm, output_size), lambda b, l: (b, 0)),
            # h carried across the layer axis in a VMEM scratch (f32)
            scratch_shapes=[pltpu.VMEM((bm, H), jnp.float32)],
        ),
        compiler_params=pltpu.CompilerParams(
            dimension_semantics=("parallel", "arbitrary")),
    )(x, we, be, wih, b3, wo, bo)


def init_torch_params(key, input_size, hidden_size, output_size, n_layers):
    """Synthetic parameters in the exact PyTorch layouts of the nn.Module:
       Linear: W (out, in), b (out,);  LSTMCell: W_ih/W_hh (4H, H) with gate
       rows ordered [i; f; g; o], b_ih/b_hh (4H,)."""
    ks = jax.random.split(key, 8)
    H, L = hidden_size, n_layers
    s = 0.1
    return dict(
        embed_w=s * jax.random.normal(ks[0], (H, input_size), jnp.float32),
        embed_b=s * jax.random.normal(ks[1], (H,), jnp.float32),
        w_ih=s * jax.random.normal(ks[2], (L, 4 * H, H), jnp.float32),
        w_hh=s * jax.random.normal(ks[3], (L, 4 * H, H), jnp.float32),
        b_ih=s * jax.random.normal(ks[4], (L, 4 * H), jnp.float32),
        b_hh=s * jax.random.normal(ks[5], (L, 4 * H), jnp.float32),
        out_w=s * jax.random.normal(ks[6], (output_size, H), jnp.float32),
        out_b=s * jax.random.normal(ks[7], (output_size,), jnp.float32),
    )


def pack_params(p, *, hidden_size, param_dtype=jnp.bfloat16):
    """Repack PyTorch-layout params for the kernel:
       * transpose weights to (in, out) so the kernel computes x @ W on the MXU
       * drop W_hh and the forget gate entirely (zero initial (h, c) makes them
         exact no-ops in this module's forward)
       * pre-sum b_ih + b_hh
       * reorder gates to [i, o | g] so sigmoid / tanh each hit one contiguous
         lane block
       * cast weights to bf16 (f32 accumulation in the kernel); biases stay f32."""
    H = hidden_size
    we = jnp.transpose(p['embed_w']).astype(param_dtype)           # (in, H)
    be = p['embed_b'][None, :].astype(jnp.float32)                 # (1, H)

    w = p['w_ih']                                                  # (L, 4H, H) rows [i; f; g; o]
    w_iog = jnp.concatenate([w[:, 0 * H:1 * H],                    # i
                             w[:, 3 * H:4 * H],                    # o
                             w[:, 2 * H:3 * H]], axis=1)           # g  -> (L, 3H, H)
    wih = jnp.transpose(w_iog, (0, 2, 1)).astype(param_dtype)      # (L, H, 3H)

    b = p['b_ih'] + p['b_hh']                                      # (L, 4H)
    b_iog = jnp.concatenate([b[:, 0 * H:1 * H],
                             b[:, 3 * H:4 * H],
                             b[:, 2 * H:3 * H]], axis=1)           # (L, 3H)
    b3 = b_iog[:, None, :].astype(jnp.float32)                     # (L, 1, 3H)

    wo = jnp.transpose(p['out_w']).astype(param_dtype)             # (H, out)
    bo = p['out_b'][None, :].astype(jnp.float32)                   # (1, out)
    return we, be, wih, b3, wo, bo


def reference_forward(x, p, *, hidden_size, n_layers):
    """Pure-JAX f32 reference with the FULL PyTorch LSTMCell math (including
    the W_hh matmul and forget gate against the zero initial state)."""
    H = hidden_size
    h_in = x @ p['embed_w'].T + p['embed_b']
    for l in range(n_layers):
        h0 = jnp.zeros_like(h_in)
        c0 = jnp.zeros_like(h_in)
        g = (h_in @ p['w_ih'][l].T + h0 @ p['w_hh'][l].T
             + p['b_ih'][l] + p['b_hh'][l])
        i = jax.nn.sigmoid(g[:, 0 * H:1 * H])
        f = jax.nn.sigmoid(g[:, 1 * H:2 * H])
        gg = jnp.tanh(g[:, 2 * H:3 * H])
        o = jax.nn.sigmoid(g[:, 3 * H:4 * H])
        c = f * c0 + i * gg
        h_in = o * jnp.tanh(c)
    return jnp.tanh(h_in @ p['out_w'].T + p['out_b'])


if __name__ == "__main__":
    batch = 2
    input_size = 16
    hidden_size = 32
    output_size = 8
    n_layers = 2

    key = jax.random.PRNGKey(0)
    kx, kp = jax.random.split(key)
    x = jax.random.normal(kx, (batch, input_size), jnp.float32)
    params = init_torch_params(kp, input_size, hidden_size, output_size, n_layers)
    packed = pack_params(params, hidden_size=hidden_size)

    out = lstm_forward(x, packed, hidden_size=hidden_size, n_layers=n_layers)
    out = jax.block_until_ready(out)

    ref = reference_forward(x, params, hidden_size=hidden_size, n_layers=n_layers)
    assert out.shape == (batch, output_size)
    # bf16 weights/activations in the matmuls -> loose tolerance vs f32 reference
    assert jnp.allclose(out, ref, atol=2e-2, rtol=2e-2), \
        float(jnp.max(jnp.abs(out - ref)))

    print("KERNEL_OK")
</pallas_src>

<mosaic_0001>
module attributes {stable_mosaic.version = 11 : i64} {
  func.func @_lstm_kernel(%arg0: i32, %arg1: i32, %arg2: memref<2x16xf32, #tpu.memory_space<vmem>>, %arg3: memref<16x32xbf16, #tpu.memory_space<vmem>>, %arg4: memref<1x32xf32, #tpu.memory_space<vmem>>, %arg5: memref<1x32x96xbf16, #tpu.memory_space<vmem>>, %arg6: memref<1x1x96xf32, #tpu.memory_space<vmem>>, %arg7: memref<32x8xbf16, #tpu.memory_space<vmem>>, %arg8: memref<1x8xf32, #tpu.memory_space<vmem>>, %arg9: memref<2x8xf32, #tpu.memory_space<vmem>>, %arg10: memref<2x32xf32, #tpu.memory_space<vmem>>) attributes {dimension_semantics = [#tpu.dimension_semantics<parallel>, #tpu.dimension_semantics<arbitrary>], iteration_bounds = array<i64: 1, 2>, scalar_prefetch = 0 : i64, scratch_operands = 1 : i64, tpu.core_type = #tpu.core_type<tc>, window_params = [{transform_indices = @transform_0, window_bounds = array<i64: 2, 16>}, {pipeline_mode = #tpu.pipeline_mode<synchronous>, transform_indices = @transform_1, window_bounds = array<i64: 16, 32>}, {pipeline_mode = #tpu.pipeline_mode<synchronous>, transform_indices = @transform_2, window_bounds = array<i64: 1, 32>}, {transform_indices = @transform_3, window_bounds = array<i64: 1, 32, 96>}, {transform_indices = @transform_4, window_bounds = array<i64: 1, 1, 96>}, {pipeline_mode = #tpu.pipeline_mode<synchronous>, transform_indices = @transform_5, window_bounds = array<i64: 32, 8>}, {pipeline_mode = #tpu.pipeline_mode<synchronous>, transform_indices = @transform_6, window_bounds = array<i64: 1, 8>}, {transform_indices = @transform_7, window_bounds = array<i64: 2, 8>}]} {
    %c0_i32 = arith.constant 0 : i32
    %0 = arith.cmpi eq, %arg1, %c0_i32 : i32
    %1 = arith.extui %0 : i1 to i32
    %c0_i32_0 = arith.constant 0 : i32
    %2 = arith.cmpi ne, %1, %c0_i32_0 : i32
    scf.if %2 {
      %c0_14 = arith.constant 0 : index
      %c0_15 = arith.constant 0 : index
      %31 = vector.load %arg2[%c0_14, %c0_15] : memref<2x16xf32, #tpu.memory_space<vmem>>, vector<2x16xf32>
      %32 = arith.truncf %31 : vector<2x16xf32> to vector<2x16xbf16>
      %c0_16 = arith.constant 0 : index
      %c0_17 = arith.constant 0 : index
      %33 = vector.load %arg3[%c0_16, %c0_17] : memref<16x32xbf16, #tpu.memory_space<vmem>>, vector<16x32xbf16>
      %cst_18 = arith.constant dense<0.000000e+00> : vector<2x32xf32>
      %34 = tpu.matmul %32, %33, %cst_18 {dimension_numbers = #tpu.dot_dimension_numbers<[1], [0], [0], [1], [0, 0, 1, 1], [], []>} : vector<2x16xbf16>, vector<16x32xbf16>, vector<2x32xf32> -> vector<2x32xf32>
      %c0_19 = arith.constant 0 : index
      %c0_20 = arith.constant 0 : index
      %35 = vector.load %arg4[%c0_19, %c0_20] : memref<1x32xf32, #tpu.memory_space<vmem>>, vector<1x32xf32>
      %36 = vector.broadcast %35 : vector<1x32xf32> to vector<2x32xf32>
      %37 = arith.addf %34, %36 : vector<2x32xf32>
      %c0_21 = arith.constant 0 : index
      %c0_22 = arith.constant 0 : index
      %38 = vector.load %arg10[%c0_21, %c0_22] : memref<2x32xf32, #tpu.memory_space<vmem>>, vector<2x32xf32>
      tpu.vector_store %arg10[%c0_21, %c0_22], %37 {strides = array<i32>} : memref<2x32xf32, #tpu.memory_space<vmem>>, vector<2x32xf32>,
    } else {
    }
    %c0 = arith.constant 0 : index
    %c0_1 = arith.constant 0 : index
    %3 = vector.load %arg10[%c0, %c0_1] : memref<2x32xf32, #tpu.memory_space<vmem>>, vector<2x32xf32>
    %4 = arith.truncf %3 : vector<2x32xf32> to vector<2x32xbf16>
    %c0_2 = arith.constant 0 : index
    %c0_3 = arith.constant 0 : index
    %c0_4 = arith.constant 0 : index
    %5 = vector.load %arg5[%c0_2, %c0_3, %c0_4] : memref<1x32x96xbf16, #tpu.memory_space<vmem>>, vector<1x32x96xbf16>
    %6 = vector.shape_cast %5 : vector<1x32x96xbf16> to vector<32x96xbf16>
    %cst = arith.constant dense<0.000000e+00> : vector<2x96xf32>
    %7 = tpu.matmul %4, %6, %cst {dimension_numbers = #tpu.dot_dimension_numbers<[1], [0], [0], [1], [0, 0, 1, 1], [], []>} : vector<2x32xbf16>, vector<32x96xbf16>, vector<2x96xf32> -> vector<2x96xf32>
    %c0_5 = arith.constant 0 : index
    %c0_6 = arith.constant 0 : index
    %c0_7 = arith.constant 0 : index
    %8 = vector.load %arg6[%c0_5, %c0_6, %c0_7] : memref<1x1x96xf32, #tpu.memory_space<vmem>>, vector<1x1x96xf32>
    %9 = vector.shape_cast %8 : vector<1x1x96xf32> to vector<1x96xf32>
    %10 = vector.broadcast %9 : vector<1x96xf32> to vector<2x96xf32>
    %11 = arith.addf %7, %10 : vector<2x96xf32>
    %12 = vector.extract_strided_slice %11 {offsets = [0, 0], sizes = [2, 64], strides = [1, 1]} : vector<2x96xf32> to vector<2x64xf32>
    %cst_8 = arith.constant 5.000000e-01 : f32
    %13 = vector.broadcast %cst_8 : f32 to vector<2x64xf32>
    %14 = arith.mulf %13, %12 : vector<2x64xf32>
    %15 = math.tanh %14 : vector<2x64xf32>
    %cst_9 = arith.constant 5.000000e-01 : f32
    %16 = vector.broadcast %cst_9 : f32 to vector<2x64xf32>
    %17 = arith.mulf %16, %15 : vector<2x64xf32>
    %cst_10 = arith.constant 5.000000e-01 : f32
    %18 = vector.broadcast %cst_10 : f32 to vector<2x64xf32>
    %19 = arith.addf %17, %18 : vector<2x64xf32>
    %20 = vector.extract_strided_slice %11 {offsets = [0, 64], sizes = [2, 32], strides = [1, 1]} : vector<2x96xf32> to vector<2x32xf32>
    %21 = math.tanh %20 : vector<2x32xf32>
    %22 = vector.extract_strided_slice %19 {offsets = [0, 0], sizes = [2, 32], strides = [1, 1]} : vector<2x64xf32> to vector<2x32xf32>
    %23 = vector.extract_strided_slice %19 {offsets = [0, 32], sizes = [2, 32], strides = [1, 1]} : vector<2x64xf32> to vector<2x32xf32>
    %24 = arith.mulf %22, %21 : vector<2x32xf32>
    %25 = math.tanh %24 : vector<2x32xf32>
    %26 = arith.mulf %23, %25 : vector<2x32xf32>
    %c0_11 = arith.constant 0 : index
    %c0_12 = arith.constant 0 : index
    %27 = vector.load %arg10[%c0_11, %c0_12] : memref<2x32xf32, #tpu.memory_space<vmem>>, vector<2x32xf32>
    tpu.vector_store %arg10[%c0_11, %c0_12], %26 {strides = array<i32>} : memref<2x32xf32, #tpu.memory_space<vmem>>, vector<2x32xf32>,
    %c1_i32 = arith.constant 1 : i32
    %28 = arith.cmpi eq, %arg1, %c1_i32 : i32
    %29 = arith.extui %28 : i1 to i32
    %c0_i32_13 = arith.constant 0 : i32
    %30 = arith.cmpi ne, %29, %c0_i32_13 : i32
    scf.if %30 {
      %c0_14 = arith.constant 0 : index
      %c0_15 = arith.constant 0 : index
      %31 = vector.load %arg10[%c0_14, %c0_15] : memref<2x32xf32, #tpu.memory_space<vmem>>, vector<2x32xf32>
      %32 = arith.truncf %31 : vector<2x32xf32> to vector<2x32xbf16>
      %c0_16 = arith.constant 0 : index
      %c0_17 = arith.constant 0 : index
      %33 = vector.load %arg7[%c0_16, %c0_17] : memref<32x8xbf16, #tpu.memory_space<vmem>>, vector<32x8xbf16>
      %cst_18 = arith.constant dense<0.000000e+00> : vector<2x8xf32>
      %34 = tpu.matmul %32, %33, %cst_18 {dimension_numbers = #tpu.dot_dimension_numbers<[1], [0], [0], [1], [0, 0, 1, 1], [], []>} : vector<2x32xbf16>, vector<32x8xbf16>, vector<2x8xf32> -> vector<2x8xf32>
      %c0_19 = arith.constant 0 : index
      %c0_20 = arith.constant 0 : index
      %35 = vector.load %arg8[%c0_19, %c0_20] : memref<1x8xf32, #tpu.memory_space<vmem>>, vector<1x8xf32>
      %36 = vector.broadcast %35 : vector<1x8xf32> to vector<2x8xf32>
      %37 = arith.addf %34, %36 : vector<2x8xf32>
      %38 = math.tanh %37 : vector<2x8xf32>
      %c0_21 = arith.constant 0 : index
      %c0_22 = arith.constant 0 : index
      %39 = vector.load %arg9[%c0_21, %c0_22] : memref<2x8xf32, #tpu.memory_space<vmem>>, vector<2x8xf32>
      tpu.vector_store %arg9[%c0_21, %c0_22], %38 {strides = array<i32>} : memref<2x8xf32, #tpu.memory_space<vmem>>, vector<2x8xf32>,
    } else {
    }
    return
  }
  func.func @transform_0(%arg0: i32, %arg1: i32) -> (i32, i32) {
    %c0_i32 = arith.constant 0 : i32
    %c0_i32_0 = arith.constant 0 : i32
    return %arg0, %c0_i32 : i32, i32
  }
  func.func @transform_1(%arg0: i32, %arg1: i32) -> (i32, i32) {
    %c0_i32 = arith.constant 0 : i32
    %c0_i32_0 = arith.constant 0 : i32
    %c0_i32_1 = arith.constant 0 : i32
    return %c0_i32, %c0_i32_0 : i32, i32
  }
  func.func @transform_2(%arg0: i32, %arg1: i32) -> (i32, i32) {
    %c0_i32 = arith.constant 0 : i32
    %c0_i32_0 = arith.constant 0 : i32
    %c0_i32_1 = arith.constant 0 : i32
    return %c0_i32, %c0_i32_0 : i32, i32
  }
  func.func @transform_3(%arg0: i32, %arg1: i32) -> (i32, i32, i32) {
    %c0_i32 = arith.constant 0 : i32
    %c0_i32_0 = arith.constant 0 : i32
    %c0_i32_1 = arith.constant 0 : i32
    return %arg1, %c0_i32, %c0_i32_0 : i32, i32, i32
  }
  func.func @transform_4(%arg0: i32, %arg1: i32) -> (i32, i32, i32) {
    %c0_i32 = arith.constant 0 : i32
    %c0_i32_0 = arith.constant 0 : i32
    %c0_i32_1 = arith.constant 0 : i32
    return %arg1, %c0_i32, %c0_i32_0 : i32, i32, i32
  }
  func.func @transform_5(%arg0: i32, %arg1: i32) -> (i32, i32) {
    %c0_i32 = arith.constant 0 : i32
    %c0_i32_0 = arith.constant 0 : i32
    %c0_i32_1 = arith.constant 0 : i32
    return %c0_i32, %c0_i32_0 : i32, i32
  }
  func.func @transform_6(%arg0: i32, %arg1: i32) -> (i32, i32) {
    %c0_i32 = arith.constant 0 : i32
    %c0_i32_0 = arith.constant 0 : i32
    %c0_i32_1 = arith.constant 0 : i32
    return %c0_i32, %c0_i32_0 : i32, i32
  }
  func.func @transform_7(%arg0: i32, %arg1: i32) -> (i32, i32) {
    %c0_i32 = arith.constant 0 : i32
    %c0_i32_0 = arith.constant 0 : i32
    return %arg0, %c0_i32 : i32, i32
  }
}

</mosaic_0001>

<llo_original>
// kernel: tpu_custom_call.1
$region0: #{tpu_custom_call.1}
  #allocation0 [shape = 'u32[]', space=smem, size = 0x4, offset = 0x4, fixed_abs, tag = 'smem constant byte address 0x4 - core index']
  #allocation1 [shape = 'u32[144,128]{1,0:T(1,128)}', space=vmem, size = 0x12000, scoped, tag = 'internal scratch']
  #allocation2 [shape = 'f32[2,32]{1,0:T(2,128)}', space=vmem, size = 0x400, scoped, tag = 'scratch operand']
  %s0 = inlined_call_operand.vmem [shape: f32[2,16], index: 0, kind: input, shape index: {}]
  %s1 = inlined_call_operand.vmem [shape: bf16[16,32], index: 1, kind: input, shape index: {}]
  %s2 = inlined_call_operand.vmem [shape: f32[1,32], index: 2, kind: input, shape index: {}]
  %s3 = inlined_call_operand.hbm [shape: bf16[2,32,96], index: 3, kind: input, shape index: {}]
  %s4 = inlined_call_operand.vmem [shape: f32[2,1,96], index: 4, kind: input, shape index: {}]
  %s5 = inlined_call_operand.vmem [shape: bf16[32,8], index: 5, kind: input, shape index: {}]
  %s6 = inlined_call_operand.vmem [shape: f32[1,8], index: 6, kind: input, shape index: {}]
  %s7 = inlined_call_operand.hbm [shape: f32[2,8], index: 7, kind: output, shape index: {}]
  %s8 = sld [smem:[#allocation0]]
  $region73: #{tpu_custom_call.1} parent=0
    _
  %s10 = ssub.s32 1, %s8
  %s11 = scalar_select 0, %s10, %s8
  $region1: #{tpu_custom_call.1} parent=0
    #allocation3 [shape = 'u8[16384]{0}', space=vmem, size = 0x4000, scoped, tag = 'input window, operand 3']
    #allocation4 [shape = 's32[2]{0}', space=sflag, size = 0x8, scoped, tag = 'scoped memory for tpu_custom_call.1']
    #allocation5 [shape = 's32[2]{0}', space=sflag, size = 0x8, scoped, tag = 'scoped memory for tpu_custom_call.1']
    #allocation6 [shape = 'u8[1024]{0}', space=vmem, size = 0x400, scoped, tag = 'output window, operand 0, single buffered']
    %12 = vsyncpa [#allocation4], 0
    %s13 = scalar_lea.sflag [#allocation4], 1
    %14 = vsyncpa %s13, 0
    %15 = vsyncpa [#allocation5], 0
    loop: start=0, step=1, limit=4
    $region2: #{tpu_custom_call.1} parent=1 // loop_pre_header
      _
    $region3: #{tpu_custom_call.1} parent=1 // loop_header
      %s17 = sphi 0, %s21
      %p18 = scmp.ge.s32.totalorder %s17, 4
      %s24 = sphi 0, %s36
      %s25 = sphi 0, %s32
      %s26 = sphi 0, %s24
      %s27 = sphi 0, %s25
      %s28 = sphi 0, %s26
      %s29 = sphi 0, %s27
      %s39 = sphi 0, %s41
      %s42 = sphi 0, %s39
      %s43 = sphi 0, %s42
      %s59 = sphi 0, %s43
      %s63 = sphi 0, %s63
      %s65 = sphi 0, %s63
      %s66 = sphi 0, %s65
      %s80 = sphi 0, %s66
      %s84 = sphi 0, %s84
      %s86 = sphi 0, %s84
      %s87 = sphi 0, %s86
      %s101 = sphi 0, %s87
      %s107 = sphi 0, %s109
      %s110 = sphi 0, %s107
      %s111 = sphi 0, %s110
      %s127 = sphi 0, %s111
      %s133 = sphi 0, %s135
      %s136 = sphi 0, %s133
      %s137 = sphi 0, %s136
      %s153 = sphi 0, %s137
      %s157 = sphi 0, %s157
      %s159 = sphi 0, %s157
      %s160 = sphi 0, %s159
      %s174 = sphi 0, %s160
      %s178 = sphi 0, %s178
      %s180 = sphi 0, %s178
      %s181 = sphi 0, %s180
      %s195 = sphi 0, %s181
      %s201 = sphi 0, %s203
      %s204 = sphi 0, %s201
      %s205 = sphi 0, %s204
      %s221 = sphi 0, %s205
    $region4: #{tpu_custom_call.1} parent=1 // loop_header_branch
      %20 = sbr.rel (%p18) target = $region8
    $region5: #{tpu_custom_call.1} parent=1 // loop_body
      %s22 = ssub.s32 %s17, 1
      %s23 = ssub.s32 %s17, 2
      %s30 = sadd.s32 1, %s25
      %p31 = scmp.ge.s32.totalorder %s30, 2
      %s32 = scalar_select %p31, 0, %s30
      %s33 = sadd.s32 1, %s24
      %s34 = scalar_select %p31, %s33, %s24
      %p35 = scmp.ge.s32.totalorder %s34, 1
      %s36 = scalar_select %p35, 0, %s34
      %s37 = ssub.s32 %s24, %s36
      %p38 = scmp.eq.s32.totalorder %s37, 0
      %s40 = sadd.s32 %s39, 1
      %s41 = scalar_select %p38, %s39, %s40
      %p44 = pneg %p38
      %p45 = scmp.eq.s32.totalorder %s17, 1
      %p46 = por %p44, %p45
      %p47 = scmp.ne.s32.totalorder %s39, %s42
      %p48 = scmp.eq.s32.totalorder %s17, 0
      %p49 = por %p47, %p48
      %p50 = scmp.ne.s32.totalorder %s39, %s42
      %p51 = scmp.eq.s32.totalorder %s22, 1
      %p52 = por %p50, %p51
      %p53 = scmp.ne.s32.totalorder %s42, %s43
      %p54 = scmp.eq.s32.totalorder %s22, 0
      %p55 = por %p53, %p54
      %p56 = scmp.ne.s32.totalorder %s42, %s43
      %p57 = scmp.eq.s32.totalorder %s23, 1
      %p58 = por %p56, %p57
      %p60 = scmp.ne.s32.totalorder %s43, %s59
      %p61 = scmp.eq.s32.totalorder %s23, 0
      %p62 = por %p60, %p61
      %s64 = sadd.s32 %s63, 1
      %p67 = scmp.eq.s32.totalorder %s17, 1
      %p68 = scmp.ne.s32.totalorder %s63, %s65
      %p69 = scmp.eq.s32.totalorder %s17, 0
      %p70 = por %p68, %p69
      %p71 = scmp.ne.s32.totalorder %s63, %s65
      %p72 = scmp.eq.s32.totalorder %s22, 1
      %p73 = por %p71, %p72
      %p74 = scmp.ne.s32.totalorder %s65, %s66
      %p75 = scmp.eq.s32.totalorder %s22, 0
      %p76 = por %p74, %p75
      %p77 = scmp.ne.s32.totalorder %s65, %s66
      %p78 = scmp.eq.s32.totalorder %s23, 1
      %p79 = por %p77, %p78
      %p81 = scmp.ne.s32.totalorder %s66, %s80
      %p82 = scmp.eq.s32.totalorder %s23, 0
      %p83 = por %p81, %p82
      %s85 = sadd.s32 %s84, 1
      %p88 = scmp.eq.s32.totalorder %s17, 1
      %p89 = scmp.ne.s32.totalorder %s84, %s86
      %p90 = scmp.eq.s32.totalorder %s17, 0
      %p91 = por %p89, %p90
      %p92 = scmp.ne.s32.totalorder %s84, %s86
      %p93 = scmp.eq.s32.totalorder %s22, 1
      %p94 = por %p92, %p93
      %p95 = scmp.ne.s32.totalorder %s86, %s87
      %p96 = scmp.eq.s32.totalorder %s22, 0
      %p97 = por %p95, %p96
      %p98 = scmp.ne.s32.totalorder %s86, %s87
      %p99 = scmp.eq.s32.totalorder %s23, 1
      %p100 = por %p98, %p99
      %p102 = scmp.ne.s32.totalorder %s87, %s101
      %p103 = scmp.eq.s32.totalorder %s23, 0
      %p104 = por %p102, %p103
      %s105 = ssub.s32 %s25, %s32
      %p106 = scmp.eq.s32.totalorder %s105, 0
      %s108 = sadd.s32 %s107, 1
      %s109 = scalar_select %p106, %s107, %s108
      %p112 = pneg %p106
      %p113 = scmp.eq.s32.totalorder %s17, 1
      %p114 = por %p112, %p113
      %p115 = scmp.ne.s32.totalorder %s107, %s110
      %p116 = scmp.eq.s32.totalorder %s17, 0
      %p117 = por %p115, %p116
      %p118 = scmp.ne.s32.totalorder %s107, %s110
      %p119 = scmp.eq.s32.totalorder %s22, 1
      %p120 = por %p118, %p119
      %p121 = scmp.ne.s32.totalorder %s110, %s111
      %p122 = scmp.eq.s32.totalorder %s22, 0
      %p123 = por %p121, %p122
      %p124 = scmp.ne.s32.totalorder %s110, %s111
      %p125 = scmp.eq.s32.totalorder %s23, 1
      %p126 = por %p124, %p125
      %p128 = scmp.ne.s32.totalorder %s111, %s127
      %p129 = scmp.eq.s32.totalorder %s23, 0
      %p130 = por %p128, %p129
      %s131 = ssub.s32 %s25, %s32
      %p132 = scmp.eq.s32.totalorder %s131, 0
      %s134 = sadd.s32 %s133, 1
      %s135 = scalar_select %p132, %s133, %s134
      %p138 = pneg %p132
      %p139 = scmp.eq.s32.totalorder %s17, 1
      %p140 = por %p138, %p139
      %p141 = scmp.ne.s32.totalorder %s133, %s136
      %p142 = scmp.eq.s32.totalorder %s17, 0
      %p143 = por %p141, %p142
      %p144 = scmp.ne.s32.totalorder %s133, %s136
      %p145 = scmp.eq.s32.totalorder %s22, 1
      %p146 = por %p144, %p145
      %p147 = scmp.ne.s32.totalorder %s136, %s137
      %p148 = scmp.eq.s32.totalorder %s22, 0
      %p149 = por %p147, %p148
      %p150 = scmp.ne.s32.totalorder %s136, %s137
      %p151 = scmp.eq.s32.totalorder %s23, 1
      %p152 = por %p150, %p151
      %p154 = scmp.ne.s32.totalorder %s137, %s153
      %p155 = scmp.eq.s32.totalorder %s23, 0
      %p156 = por %p154, %p155
      %s158 = sadd.s32 %s157, 1
      %p161 = scmp.eq.s32.totalorder %s17, 1
      %p162 = scmp.ne.s32.totalorder %s157, %s159
      %p163 = scmp.eq.s32.totalorder %s17, 0
      %p164 = por %p162, %p163
      %p165 = scmp.ne.s32.totalorder %s157, %s159
      %p166 = scmp.eq.s32.totalorder %s22, 1
      %p167 = por %p165, %p166
      %p168 = scmp.ne.s32.totalorder %s159, %s160
      %p169 = scmp.eq.s32.totalorder %s22, 0
      %p170 = por %p168, %p169
      %p171 = scmp.ne.s32.totalorder %s159, %s160
      %p172 = scmp.eq.s32.totalorder %s23, 1
      %p173 = por %p171, %p172
      %p175 = scmp.ne.s32.totalorder %s160, %s174
      %p176 = scmp.eq.s32.totalorder %s23, 0
      %p177 = por %p175, %p176
      %s179 = sadd.s32 %s178, 1
      %p182 = scmp.eq.s32.totalorder %s17, 1
      %p183 = scmp.ne.s32.totalorder %s178, %s180
      %p184 = scmp.eq.s32.totalorder %s17, 0
      %p185 = por %p183, %p184
      %p186 = scmp.ne.s32.totalorder %s178, %s180
      %p187 = scmp.eq.s32.totalorder %s22, 1
      %p188 = por %p186, %p187
      %p189 = scmp.ne.s32.totalorder %s180, %s181
      %p190 = scmp.eq.s32.totalorder %s22, 0
      %p191 = por %p189, %p190
      %p192 = scmp.ne.s32.totalorder %s180, %s181
      %p193 = scmp.eq.s32.totalorder %s23, 1
      %p194 = por %p192, %p193
      %p196 = scmp.ne.s32.totalorder %s181, %s195
      %p197 = scmp.eq.s32.totalorder %s23, 0
      %p198 = por %p196, %p197
      %s199 = ssub.s32 %s24, %s36
      %p200 = scmp.eq.s32.totalorder %s199, 0
      %s202 = sadd.s32 %s201, 1
      %s203 = scalar_select %p200, %s201, %s202
      %p206 = pneg %p200
      %p207 = scmp.eq.s32.totalorder %s17, 1
      %p208 = por %p206, %p207
      %p209 = scmp.ne.s32.totalorder %s201, %s204
      %p210 = scmp.eq.s32.totalorder %s17, 0
      %p211 = por %p209, %p210
      %p212 = scmp.ne.s32.totalorder %s201, %s204
      %p213 = scmp.eq.s32.totalorder %s22, 1
      %p214 = por %p212, %p213
      %p215 = scmp.ne.s32.totalorder %s204, %s205
      %p216 = scmp.eq.s32.totalorder %s22, 0
      %p217 = por %p215, %p216
      %p218 = scmp.ne.s32.totalorder %s204, %s205
      %p219 = scmp.eq.s32.totalorder %s23, 1
      %p220 = por %p218, %p219
      %p222 = scmp.ne.s32.totalorder %s205, %s221
      %p223 = scmp.eq.s32.totalorder %s23, 0
      %p224 = por %p222, %p223
      %p225 = scmp.le.s32.totalorder 1, %s17
      %p226 = scmp.lt.s32.totalorder %s17, 3
      %p227 = pnand %p225, %p226
      %p228 = pneg %p227
      // Predicated region
      $region9: #{tpu_custom_call.1} parent=5 // pred_check
        _
      $region10: #{tpu_custom_call.1} parent=5 // pred_check_branch
        %230 = sbr.rel (%p227) target = $region12
      $region11: #{tpu_custom_call.1} parent=5 // pred_region
        %s231 = ssub.s32 %s17, 1
        // Predicated region
        $region13: #{tpu_custom_call.1} parent=11 // pred_check
          %p232 = pneg %p55
        $region14: #{tpu_custom_call.1} parent=11 // pred_check_branch
          %234 = sbr.rel (%p232) target = $region16
        $region15: #{tpu_custom_call.1} parent=11 // pred_region
          %p235 = scmp.lt.s32.totalorder %s26, 0
          %s236 = scalar_select %p235, %s26, 0
          %s237 = smul.addr %s236, 2
          %s238 = scalar_lea.vmem %s0, %s237
        $region16: #{tpu_custom_call.1} parent=11 // pred_fallthru
          _
        // Predicated region
        $region17: #{tpu_custom_call.1} parent=11 // pred_check
          %p239 = pneg %p76
        $region18: #{tpu_custom_call.1} parent=11 // pred_check_branch
          %241 = sbr.rel (%p239) target = $region20
        $region19: #{tpu_custom_call.1} parent=11 // pred_region
          _
        $region20: #{tpu_custom_call.1} parent=11 // pred_fallthru
          _
        // Predicated region
        $region21: #{tpu_custom_call.1} parent=11 // pred_check
          %p242 = pneg %p97
        $region22: #{tpu_custom_call.1} parent=11 // pred_check_branch
          %244 = sbr.rel (%p242) target = $region24
        $region23: #{tpu_custom_call.1} parent=11 // pred_region
          _
        $region24: #{tpu_custom_call.1} parent=11 // pred_fallthru
          _
        // Predicated region
        $region25: #{tpu_custom_call.1} parent=11 // pred_check
          %p245 = pneg %p170
        $region26: #{tpu_custom_call.1} parent=11 // pred_check_branch
          %247 = sbr.rel (%p245) target = $region28
        $region27: #{tpu_custom_call.1} parent=11 // pred_region
          _
        $region28: #{tpu_custom_call.1} parent=11 // pred_fallthru
          _
        // Predicated region
        $region29: #{tpu_custom_call.1} parent=11 // pred_check
          %p248 = pneg %p191
        $region30: #{tpu_custom_call.1} parent=11 // pred_check_branch
          %250 = sbr.rel (%p248) target = $region32
        $region31: #{tpu_custom_call.1} parent=11 // pred_region
          _
        $region32: #{tpu_custom_call.1} parent=11 // pred_fallthru
          _
      $region12: #{tpu_custom_call.1} parent=5 // pred_fallthru
        _
      %p251 = scmp.lt.s32.totalorder %s17, 2
      // Predicated region
      $region33: #{tpu_custom_call.1} parent=5 // pred_check
        %p252 = pneg %p251
      $region34: #{tpu_custom_call.1} parent=5 // pred_check_branch
        %254 = sbr.rel (%p252) target = $region36
      $region35: #{tpu_custom_call.1} parent=5 // pred_region
        // Predicated region
        $region37: #{tpu_custom_call.1} parent=35 // pred_check
          %p255 = pneg %p117
        $region38: #{tpu_custom_call.1} parent=35 // pred_check_branch
          %257 = sbr.rel (%p255) target = $region40
        $region39: #{tpu_custom_call.1} parent=35 // pred_region
          %s258 = sand.u32 %s107, 1
          %s259 = scalar_lea.sflag [#allocation4], %s258
          %s260 = sand.u32 %s107, 1
          %s261 = smul.addr %s260, 16
          %s262 = scalar_lea.vmem [#allocation3], %s261
          %s264 = ssub.s32 256, 256
          %265 = vsyncadd %s259, %s264
          %s266 = smul.addr %s25, 4
          %s267 = smul.addr %s266, 64
          %s268 = scalar_lea.hbm %s3, %s267
          %s269 = sshll.u32 %s262, 4
          %s270 = int_to_ptr.vmem [resolvable:$true] %s269
          %275 = dma.hbm_to_vmem [thread:$0]  %s268, 256, %s270, %s259, 64, 64, 4
        $region40: #{tpu_custom_call.1} parent=35 // pred_fallthru
          _
        // Predicated region
        $region41: #{tpu_custom_call.1} parent=35 // pred_check
          %p276 = pneg %p143
        $region42: #{tpu_custom_call.1} parent=35 // pred_check_branch
          %278 = sbr.rel (%p276) target = $region44
        $region43: #{tpu_custom_call.1} parent=35 // pred_region
          %p279 = scmp.lt.s32.totalorder %s25, 1
          %s280 = scalar_select %p279, %s25, 1
          %s281 = scalar_lea.vmem %s4, %s280
        $region44: #{tpu_custom_call.1} parent=35 // pred_fallthru
          _
      $region36: #{tpu_custom_call.1} parent=5 // pred_fallthru
        _
      %p282 = scmp.le.s32.totalorder 1, %s17
      %p283 = scmp.lt.s32.totalorder %s17, 3
      %p284 = pnand %p282, %p283
      %p285 = pneg %p284
      // Predicated region
      $region45: #{tpu_custom_call.1} parent=5 // pred_check
        _
      $region46: #{tpu_custom_call.1} parent=5 // pred_check_branch
        %287 = sbr.rel (%p284) target = $region48
      $region47: #{tpu_custom_call.1} parent=5 // pred_region
        %s288 = ssub.s32 %s17, 1
        %s289 = sand.u32 %s110, 1
        %s290 = scalar_lea.sflag [#allocation4], %s289
        %s291 = sand.u32 %s110, 1
        %s292 = smul.addr %s291, 16
        %s293 = scalar_lea.vmem [#allocation3], %s292
        // Predicated region
        $region49: #{tpu_custom_call.1} parent=47 // pred_check
          %p294 = pneg %p123
        $region50: #{tpu_custom_call.1} parent=47 // pred_check_branch
          %296 = sbr.rel (%p294) target = $region52
        $region51: #{tpu_custom_call.1} parent=47 // pred_region
          %297 = dma.done %s290, 256
        $region52: #{tpu_custom_call.1} parent=47 // pred_fallthru
          _
        %p298 = scmp.lt.s32.totalorder %s26, 0
        %s299 = scalar_select %p298, %s26, 0
        %s300 = smul.addr %s299, 2
        %s301 = scalar_lea.vmem %s0, %s300
        %p302 = pneg %p55
        %p303 = pneg %p52
        %p304 = pneg %p76
        %p305 = pneg %p73
        %p306 = pneg %p97
        %p307 = pneg %p94
        %s308 = sand.u32 %s110, 1
        %s309 = scalar_lea.sflag [#allocation4], %s308
        %s310 = sand.u32 %s110, 1
        %s311 = smul.addr %s310, 16
        %s312 = scalar_lea.vmem [#allocation3], %s311
        %p313 = pneg %p123
        %p314 = pneg %p120
        %p315 = scmp.lt.s32.totalorder %s27, 1
        %s316 = scalar_select %p315, %s27, 1
        %s317 = scalar_lea.vmem %s4, %s316
        %p318 = pneg %p149
        %p319 = pneg %p146
        %p320 = pneg %p170
        %p321 = pneg %p167
        %p322 = pneg %p191
        %p323 = pneg %p188
        %p324 = pneg %p217
        %p325 = pneg %p214
        %p326 = scmp.lt.s32.totalorder %s26, 0
        %s327 = scalar_select %p326, %s26, 0
        %s328 = smul.addr %s327, 2
        %s329 = scalar_lea.vmem %s0, %s328
        %p330 = scmp.lt.s32.totalorder %s27, 1
        %s331 = scalar_select %p330, %s27, 1
        %s332 = scalar_lea.vmem %s4, %s331
        %p334 = scmp.eq.s32.totalorder %s27, 0
        // Predicated region
        $region53: #{tpu_custom_call.1} parent=47 // pred_check
          %p335 = pneg %p334
        $region54: #{tpu_custom_call.1} parent=47 // pred_check_branch
          %337 = sbr.rel (%p335) target = $region56
        $region55: #{tpu_custom_call.1} parent=47 // pred_region
          %v338 = vld [vmem:[%s329] sm:$0x3]
          %v339 = vpack.c.bf16 %v338, %v338
          %v340 = vld [vmem:[%s1] sm:$0xf]
          %v341 = vld [vmem:[%s1 + $0x4] sm:$0xf]
          %v342 = vld [vmem:[%s2] sm:$0x1]
          %v344 = vlaneseq
          %v345 = vshrl.u32 %v344, 7
          %v346 = vsub.s32 0, %v345
          %v347 = vrot.slane %v342, %v346
          %v351 = vunpack.c.l.b16 %v340
          %v352 = vunpack.c.l.b16 %v341
          %v353 = vpack.c.b16 %v352, %v351
          %vm355 = vcmask 130048
          %v357 = vsel %vm355, %v339, 0
          %359 = vmatprep.subr.bf16.mxu0 0
          %360 = vmatpush1.bf16.msra.mxu0 %v353
          %361 = vmatprep.subr.bf16.mxu0 0
          %362 = vmatpush1.bf16.msra.mxu0 0
          %363 = vmatprep.subr.bf16.mxu0 0
          %364 = vmatpush1.bf16.msra.mxu0 0
          %365 = vmatprep.subr.bf16.mxu0 0
          %366 = vmatpush1.bf16.msra.mxu0 0
          %367 = vmatprep.subr.bf16.mxu0 0
          %368 = vmatpush1.bf16.msra.mxu0 0
          %369 = vmatprep.subr.bf16.mxu0 0
          %370 = vmatpush1.bf16.msra.mxu0 0
          %371 = vmatprep.subr.bf16.mxu0 0
          %372 = vmatpush1.bf16.msra.mxu0 0
          %373 = vmatprep.subr.bf16.mxu0 0
          %374 = vmatpush1.bf16.msra.mxu0 0
          %375 = vmatprep.subr.bf16.mxu0 0
          %376 = vmatpush1.bf16.msra.mxu0 0
          %377 = vmatprep.subr.bf16.mxu0 0
          %378 = vmatpush1.bf16.msra.mxu0 0
          %379 = vmatprep.subr.bf16.mxu0 0
          %380 = vmatpush1.bf16.msra.mxu0 0
          %381 = vmatprep.subr.bf16.mxu0 0
          %382 = vmatpush1.bf16.msra.mxu0 0
          %383 = vmatprep.subr.bf16.mxu0 0
          %384 = vmatpush1.bf16.msra.mxu0 0
          %385 = vmatprep.subr.bf16.mxu0 0
          %386 = vmatpush1.bf16.msra.mxu0 0
          %387 = vmatprep.subr.bf16.mxu0 0
          %388 = vmatpush1.bf16.msra.mxu0 0
          %389 = vmatprep.subr.bf16.mxu0 0
          %390 = vmatpush1.bf16.msra.mxu0 0
          %391 = vmatprep.mubr.bf16.mxu0 0
          %392 = vmatmul.mubr.bf16.gmra.mrb[0].mxu0 %v357
          %v393 = vpop.f32.mrb[0].mxu0
          %v394 = vadd.f32 %v347, %v393
          %v395 = vpop.f32.mrb[0].mxu0
          %v396 = vpop.f32.mrb[0].mxu0
          %v397 = vpop.f32.mrb[0].mxu0
          %398 = vdwg.mxu0
          %vm399 = vcmask 254976
          %400 = vst.msk [vmem:[#allocation2] sm:$0x3] %vm399, %v394
        $region56: #{tpu_custom_call.1} parent=47 // pred_fallthru
          _
        %v401 = vld [vmem:[#allocation2] sm:$0x3]
        %v402 = vpack.c.bf16 %v401, %v401
        %v403 = vld [vmem:[%s293] sm:$0xf]
        %v404 = vld [vmem:[%s293 + $0x4] sm:$0xf]
        %v405 = vld [vmem:[%s293 + $0x8] sm:$0xf]
        %v406 = vld [vmem:[%s293 + $0xc] sm:$0xf]
        %v407 = vld [vmem:[%s332] sm:$0x1]
        %v409 = vlaneseq
        %v410 = vshrl.u32 %v409, 7
        %v411 = vsub.s32 0, %v410
        %v412 = vrot.slane %v407, %v411
        %v418 = vunpack.c.l.b16 %v403
        %v419 = vunpack.c.l.b16 %v404
        %v420 = vunpack.c.l.b16 %v405
        %v421 = vunpack.c.l.b16 %v406
        %v422 = vpack.c.b16 %v419, %v418
        %v423 = vpack.c.b16 %v421, %v420
        %vm426 = vcmask 261120
        %v428 = vsel %vm426, %v402, 0
        %430 = vmatprep.subr.bf16.mxu0 0
        %431 = vmatpush1.bf16.msra.mxu0 %v422
        %432 = vmatprep.subr.bf16.mxu0 0
        %433 = vmatpush1.bf16.msra.mxu0 %v423
        %434 = vmatprep.subr.bf16.mxu0 0
        %435 = vmatpush1.bf16.msra.mxu0 0
        %436 = vmatprep.subr.bf16.mxu0 0
        %437 = vmatpush1.bf16.msra.mxu0 0
        %438 = vmatprep.subr.bf16.mxu0 0
        %439 = vmatpush1.bf16.msra.mxu0 0
        %440 = vmatprep.subr.bf16.mxu0 0
        %441 = vmatpush1.bf16.msra.mxu0 0
        %442 = vmatprep.subr.bf16.mxu0 0
        %443 = vmatpush1.bf16.msra.mxu0 0
        %444 = vmatprep.subr.bf16.mxu0 0
        %445 = vmatpush1.bf16.msra.mxu0 0
        %446 = vmatprep.subr.bf16.mxu0 0
        %447 = vmatpush1.bf16.msra.mxu0 0
        %448 = vmatprep.subr.bf16.mxu0 0
        %449 = vmatpush1.bf16.msra.mxu0 0
        %450 = vmatprep.subr.bf16.mxu0 0
        %451 = vmatpush1.bf16.msra.mxu0 0
        %452 = vmatprep.subr.bf16.mxu0 0
        %453 = vmatpush1.bf16.msra.mxu0 0
        %454 = vmatprep.subr.bf16.mxu0 0
        %455 = vmatpush1.bf16.msra.mxu0 0
        %456 = vmatprep.subr.bf16.mxu0 0
        %457 = vmatpush1.bf16.msra.mxu0 0
        %458 = vmatprep.subr.bf16.mxu0 0
        %459 = vmatpush1.bf16.msra.mxu0 0
        %460 = vmatprep.subr.bf16.mxu0 0
        %461 = vmatpush1.bf16.msra.mxu0 0
        %462 = vmatprep.mubr.bf16.mxu0 0
        %463 = vmatmul.mubr.bf16.gmra.mrb[0].mxu0 %v428
        %v464 = vpop.f32.mrb[0].mxu0
        %v465 = vadd.f32 %v412, %v464
        %v466 = vpop.f32.mrb[0].mxu0
        %v467 = vpop.f32.mrb[0].mxu0
        %v468 = vpop.f32.mrb[0].mxu0
        %469 = vdwg.mxu0
        %v470 = vmul.f32 %v465, 0.5
        %v471 = vtanh.pop %v470
        %v472 = vmul.f32 %v471, 0.5
        %v473 = vadd.f32 %v472, 0.5
        %v474 = vtanh.pop %v465
        %476 = vrot.lane.b32.xlu0 %v474, 64
        %v477 = vpop.permute.xlu0 %476
        %v479 = vmul.f32 %v473, %v477
        %v480 = vtanh.pop %v479
        %482 = vrot.lane.b32.xlu0 %v480, 32
        %v483 = vpop.permute.xlu0 %482
        %v485 = vmul.f32 %v473, %v483
        %487 = vrot.lane.b32.xlu0 %v485, 96
        %v488 = vpop.permute.xlu0 %487
        %vm490 = vcmask 254976
        %491 = vst.msk [vmem:[#allocation2] sm:$0x3] %vm490, %v488
        %p492 = scmp.eq.s32.totalorder %s27, 1
        // Predicated region
        $region57: #{tpu_custom_call.1} parent=47 // pred_check
          %p493 = pneg %p492
        $region58: #{tpu_custom_call.1} parent=47 // pred_check_branch
          %495 = sbr.rel (%p493) target = $region60
        $region59: #{tpu_custom_call.1} parent=47 // pred_region
          %v496 = vld [vmem:[#allocation2] sm:$0x3]
          %v497 = vpack.c.bf16 %v496, %v496
          %v498 = vld [vmem:[%s5] sm:$0xf]
          %v499 = vld [vmem:[%s5 + $0x4] sm:$0xf]
          %v500 = vld [vmem:[%s5 + $0x8] sm:$0xf]
          %v501 = vld [vmem:[%s5 + $0xc] sm:$0xf]
          %v502 = vld [vmem:[%s6] sm:$0x1]
          %v504 = vlaneseq
          %v505 = vshrl.u32 %v504, 7
          %v506 = vsub.s32 0, %v505
          %v507 = vrot.slane %v502, %v506
          %v513 = vunpack.c.l.b16 %v498
          %v514 = vunpack.c.l.b16 %v499
          %v515 = vunpack.c.l.b16 %v500
          %v516 = vunpack.c.l.b16 %v501
          %v517 = vpack.c.b16 %v514, %v513
          %v518 = vpack.c.b16 %v516, %v515
          %v522 = vsel %vm426, %v497, 0
          %524 = vmatprep.subr.bf16.mxu0 0
          %525 = vmatpush1.bf16.msra.mxu0 %v517
          %526 = vmatprep.subr.bf16.mxu0 0
          %527 = vmatpush1.bf16.msra.mxu0 %v518
          %528 = vmatprep.subr.bf16.mxu0 0
          %529 = vmatpush1.bf16.msra.mxu0 0
          %530 = vmatprep.subr.bf16.mxu0 0
          %531 = vmatpush1.bf16.msra.mxu0 0
          %532 = vmatprep.subr.bf16.mxu0 0
          %533 = vmatpush1.bf16.msra.mxu0 0
          %534 = vmatprep.subr.bf16.mxu0 0
          %535 = vmatpush1.bf16.msra.mxu0 0
          %536 = vmatprep.subr.bf16.mxu0 0
          %537 = vmatpush1.bf16.msra.mxu0 0
          %538 = vmatprep.subr.bf16.mxu0 0
          %539 = vmatpush1.bf16.msra.mxu0 0
          %540 = vmatprep.subr.bf16.mxu0 0
          %541 = vmatpush1.bf16.msra.mxu0 0
          %542 = vmatprep.subr.bf16.mxu0 0
          %543 = vmatpush1.bf16.msra.mxu0 0
          %544 = vmatprep.subr.bf16.mxu0 0
          %545 = vmatpush1.bf16.msra.mxu0 0
          %546 = vmatprep.subr.bf16.mxu0 0
          %547 = vmatpush1.bf16.msra.mxu0 0
          %548 = vmatprep.subr.bf16.mxu0 0
          %549 = vmatpush1.bf16.msra.mxu0 0
          %550 = vmatprep.subr.bf16.mxu0 0
          %551 = vmatpush1.bf16.msra.mxu0 0
          %552 = vmatprep.subr.bf16.mxu0 0
          %553 = vmatpush1.bf16.msra.mxu0 0
          %554 = vmatprep.subr.bf16.mxu0 0
          %555 = vmatpush1.bf16.msra.mxu0 0
          %556 = vmatprep.mubr.bf16.mxu0 0
          %557 = vmatmul.mubr.bf16.gmra.mrb[0].mxu0 %v522
          %v558 = vpop.f32.mrb[0].mxu0
          %v559 = vadd.f32 %v507, %v558
          %v560 = vpop.f32.mrb[0].mxu0
          %v561 = vpop.f32.mrb[0].mxu0
          %v562 = vpop.f32.mrb[0].mxu0
          %563 = vdwg.mxu0
          %v564 = vtanh.pop %v559
          %vm565 = vcmask 58368
          %566 = vst.msk [vmem:[#allocation6] sm:$0x3] %vm565, %v564
        $region60: #{tpu_custom_call.1} parent=47 // pred_fallthru
          _
        // Predicated region
        $region61: #{tpu_custom_call.1} parent=47 // pred_check
          %p567 = pneg %p214
        $region62: #{tpu_custom_call.1} parent=47 // pred_check_branch
          %569 = sbr.rel (%p567) target = $region64
        $region63: #{tpu_custom_call.1} parent=47 // pred_region
          %s571 = ssub.s32 32, 32
          %572 = vsyncadd [#allocation5], %s571
          %s573 = smul.addr %s26, 32
          %s574 = scalar_lea.hbm %s7, %s573
          %s576 = sshll.u32 [#allocation6], 4
          %s577 = int_to_ptr.vmem [resolvable:$true] %s576
          %579 = dma.vmem_to_hbm [thread:$0]  %s577, 32, %s574, [#allocation5]
        $region64: #{tpu_custom_call.1} parent=47 // pred_fallthru
          _
        // Predicated region
        $region65: #{tpu_custom_call.1} parent=47 // pred_check
          %p580 = pneg %p214
        $region66: #{tpu_custom_call.1} parent=47 // pred_check_branch
          %582 = sbr.rel (%p580) target = $region68
        $region67: #{tpu_custom_call.1} parent=47 // pred_region
          %583 = dma.done [#allocation5], 32
        $region68: #{tpu_custom_call.1} parent=47 // pred_fallthru
          _
      $region48: #{tpu_custom_call.1} parent=5 // pred_fallthru
        _
      %p584 = scmp.le.s32.totalorder 2, %s17
      // Predicated region
      $region69: #{tpu_custom_call.1} parent=5 // pred_check
        %p585 = pneg %p584
      $region70: #{tpu_custom_call.1} parent=5 // pred_check_branch
        %587 = sbr.rel (%p585) target = $region72
      $region71: #{tpu_custom_call.1} parent=5 // pred_region
        %s588 = ssub.s32 %s17, 2
      $region72: #{tpu_custom_call.1} parent=5 // pred_fallthru
        _
    $region6: #{tpu_custom_call.1} parent=1 // loop_footer
      %s21 = sadd.s32 1, %s17
    $region7: #{tpu_custom_call.1} parent=1 // loop_footer_branch
      %16 = sbr.rel target = $region3
    $region8: #{tpu_custom_call.1} parent=1 // loop_exit
      _
    %589 = vsyncpa [#allocation4], 1
    %s590 = scalar_lea.sflag [#allocation4], 1
    %591 = vsyncpa %s590, 1
    %592 = vsyncpa [#allocation5], 1
    %s593 = scalar_lea.sflag [#allocation5], 1
    %594 = vsyncpa %s593, 1

</llo_original>
